<compile_context>
chip_gen: v7x
topology: tpu7x:2x2x1
jax: 0.10.0
libtpu: 0.0.40
codegen_flags: <defaults>
</compile_context>

<pallas_src>
import functools

import jax
import jax.numpy as jnp
from jax import lax
from jax.experimental import pallas as pl
from jax.experimental.pallas import tpu as pltpu


# Leave headroom under v7x's 64 MiB/TC physical VMEM (v5e/v6e have 128 MiB).
_VMEM_LIMIT_BYTES = 48 * 1024 * 1024
_MAX_BATCH_TILE = 1024


def _pick_batch_tile(batch, bytes_per_row=0, fixed_bytes=0, max_rows=None):
    """Largest legal batch tile: divides `batch`, multiple of 8 (sublane rule)
    or equal to the full batch, capped so double-buffered tiles plus resident
    blocks stay under the VMEM budget."""
    max_rows = _MAX_BATCH_TILE if max_rows is None else max_rows
    budget = _VMEM_LIMIT_BYTES // 2 - 2 * fixed_bytes
    cap = max_rows
    if bytes_per_row > 0 and budget > 0:
        cap = min(cap, budget // (2 * bytes_per_row))  # 2x: double-buffering
    cap = int(max(8, cap))
    if batch <= cap:
        return batch
    cap -= cap % 8
    for t in range(max(cap, 8), 7, -8):
        if batch % t == 0:
            return t
    # TODO(synk): pad awkward batch sizes instead of one full-batch block.
    return batch


# ----------------------------------------------------------------------------
# BatchNorm1d statistics (training mode, biased variance, eps=1e-5).
# Grid over batch tiles ("arbitrary" = reduction); resident (1, C) accumulators;
# finalize into fused (scale, shift) so the main kernel only does x*scale+shift.
# ----------------------------------------------------------------------------
def _bn_stats_kernel(x_ref, gamma_ref, beta_ref, scale_ref, shift_ref,
                     sum_sc, sq_sc, *, batch_size, eps):
    i = pl.program_id(0)

    @pl.when(i == 0)
    def _():
        sum_sc[...] = jnp.zeros_like(sum_sc)
        sq_sc[...] = jnp.zeros_like(sq_sc)

    x = x_ref[...]
    sum_sc[...] += jnp.sum(x, axis=0, keepdims=True)
    sq_sc[...] += jnp.sum(x * x, axis=0, keepdims=True)

    @pl.when(i == pl.num_programs(0) - 1)
    def _():
        inv_n = 1.0 / batch_size
        mean = sum_sc[...] * inv_n
        var = sq_sc[...] * inv_n - mean * mean  # biased (torch training-mode BN)
        inv = lax.rsqrt(var + eps)
        scale = gamma_ref[...] * inv
        scale_ref[...] = scale
        shift_ref[...] = beta_ref[...] - mean * scale


def bn_scale_shift(x, gamma, beta, *, eps=1e-5, max_rows=None):
    """x: (B, C) f32, gamma/beta: (1, C) f32 -> (scale, shift) each (1, C)."""
    b, c = x.shape
    tb = _pick_batch_tile(b, bytes_per_row=4 * c, max_rows=max_rows)
    kernel = functools.partial(_bn_stats_kernel, batch_size=float(b), eps=eps)
    scale, shift = pl.pallas_call(
        kernel,
        out_shape=(jax.ShapeDtypeStruct((1, c), jnp.float32),
                   jax.ShapeDtypeStruct((1, c), jnp.float32)),
        grid=(b // tb,),
        in_specs=[
            pl.BlockSpec((tb, c), lambda i: (i, 0)),
            pl.BlockSpec((1, c), lambda i: (0, 0)),
            pl.BlockSpec((1, c), lambda i: (0, 0)),
        ],
        out_specs=(
            pl.BlockSpec((1, c), lambda i: (0, 0)),
            pl.BlockSpec((1, c), lambda i: (0, 0)),
        ),
        scratch_shapes=[pltpu.VMEM((1, c), jnp.float32),
                        pltpu.VMEM((1, c), jnp.float32)],
        compiler_params=pltpu.CompilerParams(
            dimension_semantics=("arbitrary",),      # batch reduction
            vmem_limit_bytes=_VMEM_LIMIT_BYTES),
    )(x, gamma, beta)
    return scale, shift


# ----------------------------------------------------------------------------
# Fused main kernel: embedding lookups (block-diagonal one-hot matmul),
# one-hot encoding, BatchNorm normalize — all in one batch-tiled call.
# ----------------------------------------------------------------------------
def _make_fused_kernel(onehot_meta, embed_meta, do_bn):
    """
    onehot_meta: list of (column index in categorical block, cardinality)
    embed_meta:  list of (column index in categorical block, vocab size)
    do_bn:       apply x*scale + shift to the continuous block
    """
    has_oh = bool(onehot_meta)
    has_emb = bool(embed_meta)
    has_cat = has_oh or has_emb

    def _onehot_lane_dense(codes, meta):
        """Single lane-dense one-hot of concatenated feature spans.

        Built from iota + scalar constants only: gather each row's owning code
        per output lane via masked broadcast-sums, then one compare against the
        local-class-id lane vector.
        """
        b = codes.shape[0]
        total = sum(card for _, card in meta)
        g = lax.broadcasted_iota(jnp.int32, (1, total), 1)   # global output col
        gathered = jnp.zeros((b, total), jnp.int32)
        local = g
        off = 0
        for col, card in meta:
            mask = ((g >= off) & (g < off + card)).astype(jnp.int32)  # (1, total)
            gathered = gathered + codes[:, col:col + 1] * mask        # lane bcast
            local = local - off * mask                                # global->local
            off += card
        return gathered == local   # bool (b, total); out-of-range code -> all-zero

    def kernel(*refs):
        it = iter(refs)
        cat_ref = next(it) if has_cat else None
        table_ref = next(it) if has_emb else None
        cont_ref = next(it) if do_bn else None
        scale_ref = next(it) if do_bn else None
        shift_ref = next(it) if do_bn else None
        out_emb_ref = next(it) if has_emb else None
        out_cat_ref = next(it) if has_oh else None
        out_cont_ref = next(it) if do_bn else None

        codes = cat_ref[...] if has_cat else None

        if has_emb:
            # Block-diagonal one-hot (tb, sum_V) x block-diagonal table
            # (sum_V, sum_D): one MXU matmul yields the already-concatenated,
            # lane-dense embedding slab.
            onehot = _onehot_lane_dense(codes, embed_meta).astype(jnp.float32)
            out_emb_ref[...] = jnp.dot(onehot, table_ref[...],
                                       preferred_element_type=jnp.float32)

        if has_oh:
            out_cat_ref[...] = _onehot_lane_dense(codes, onehot_meta).astype(jnp.int32)

        if do_bn:
            out_cont_ref[...] = cont_ref[...] * scale_ref[...] + shift_ref[...]

    return kernel


# ----------------------------------------------------------------------------
# Module-equivalent wrapper
# ----------------------------------------------------------------------------
class MixedEmbedding1dLayer:
    def __init__(
        self,
        continuous_dim,
        categorical_embedding_dims,
        max_onehot_cardinality=4,
        embedding_dropout=0.0,
        batch_norm_continuous_input=False,
        *,
        key,
        max_batch_tile=None,
    ):
        self.continuous_dim = continuous_dim
        self.categorical_embedding_dims = list(categorical_embedding_dims)
        self.categorical_dim = len(self.categorical_embedding_dims)
        self.batch_norm_continuous_input = batch_norm_continuous_input
        self.embedding_dropout = embedding_dropout
        self.max_batch_tile = max_batch_tile

        self._binary_feat_idx = []
        self._onehot_feat_idx = []
        self._embedding_feat_idx = []
        self.onehot_cardinalities = []
        self._embedding_vocab_dims = []   # (cardinality, embed_dim) per embedding feat

        keys = jax.random.split(key, max(self.categorical_dim, 1))
        for i, (cardinality, embed_dim) in enumerate(self.categorical_embedding_dims):
            if cardinality == 2:
                self._binary_feat_idx.append(i)
            elif cardinality <= max_onehot_cardinality:
                self._onehot_feat_idx.append(i)
                self.onehot_cardinalities.append(int(cardinality))
            else:
                self._embedding_feat_idx.append(i)
                self._embedding_vocab_dims.append((int(cardinality), int(embed_dim)))

        # Block-diagonal concatenation of the per-feature nn.Embedding tables
        # (N(0,1) init) into one (sum_V, sum_D) f32 matrix; one matmul then
        # produces the concatenated embedding output directly.
        # TODO(synk): for very large vocabularies this table should stay in HBM
        # (memory_space=pl.ANY) with a DMA row-gather instead of a VMEM matmul.
        self.embedding_table = None
        if self._embedding_feat_idx:
            vtot = sum(v for v, _ in self._embedding_vocab_dims)
            dtot = sum(d for _, d in self._embedding_vocab_dims)
            big = jnp.zeros((vtot, dtot), jnp.float32)
            voff = doff = 0
            for feat_i, (v, d) in zip(self._embedding_feat_idx,
                                      self._embedding_vocab_dims):
                tbl = jax.random.normal(keys[feat_i], (v, d), dtype=jnp.float32)
                big = big.at[voff:voff + v, doff:doff + d].set(tbl)
                voff += v
                doff += d
            self.embedding_table = big

        if batch_norm_continuous_input:
            # nn.BatchNorm1d default init: weight=1, bias=0
            self.bn_gamma = jnp.ones((1, continuous_dim), jnp.float32)
            self.bn_beta = jnp.zeros((1, continuous_dim), jnp.float32)

        # TODO(synk): embedding_dropout > 0 (nn.Dropout on x_embed) not implemented;
        # the default 0.0 matches embd_dropout=None in the reference module.

    @property
    def embedded_cat_dim(self):
        return sum(
            d
            for i, (_, d) in enumerate(self.categorical_embedding_dims)
            if i in self._embedding_feat_idx
        )

    def __call__(self, x):
        assert "continuous" in x or "categorical" in x
        continuous_data = x.get("continuous", jnp.empty((0, 0), jnp.float32))
        categorical_data = x.get("categorical", jnp.empty((0, 0), jnp.int32))
        assert categorical_data.shape[1] == self.categorical_dim
        assert continuous_data.shape[1] == self.continuous_dim

        has_cont = continuous_data.shape[1] > 0
        has_cat = categorical_data.shape[1] > 0
        do_bn = has_cont and self.batch_norm_continuous_input
        has_oh = has_cat and bool(self._onehot_feat_idx)
        has_emb = has_cat and bool(self._embedding_feat_idx)

        x_binary = x_cat = x_cat_orig = x_embed = None
        x_cont = continuous_data

        # Cheap column selections (pass-throughs) stay as JAX glue.
        if has_cat:
            if self._binary_feat_idx:
                x_binary = jnp.take(
                    categorical_data, jnp.array(self._binary_feat_idx), axis=1)
            if self._onehot_feat_idx:
                x_cat_orig = jnp.take(
                    categorical_data, jnp.array(self._onehot_feat_idx), axis=1)
            assert not (not self._binary_feat_idx
                        and not self._onehot_feat_idx
                        and not self._embedding_feat_idx)

        scale = shift = None
        cont_f32 = None
        if do_bn:
            cont_f32 = continuous_data.astype(jnp.float32)
            scale, shift = bn_scale_shift(cont_f32, self.bn_gamma, self.bn_beta,
                                          max_rows=self.max_batch_tile)

        if has_oh or has_emb or do_bn:
            batch = categorical_data.shape[0] if has_cat else continuous_data.shape[0]

            # VMEM-budget-aware batch tile (double-buffered tiles + resident table).
            bytes_per_row = 0
            fixed_bytes = 0
            if has_oh or has_emb:
                bytes_per_row += categorical_data.shape[1] * 4
            if has_emb:
                vt, dt = self.embedding_table.shape
                fixed_bytes += vt * dt * 4
                bytes_per_row += (vt + dt) * 4          # one-hot intermediate + output
            if has_oh:
                bytes_per_row += sum(self.onehot_cardinalities) * 4 * 2
            if do_bn:
                bytes_per_row += continuous_data.shape[1] * 4 * 2
            tb = _pick_batch_tile(batch, bytes_per_row, fixed_bytes,
                                  max_rows=self.max_batch_tile)
            grid = (batch // tb,)

            onehot_meta = (list(zip(self._onehot_feat_idx,
                                    self.onehot_cardinalities)) if has_oh else [])
            embed_meta = ([(i, v) for i, (v, _) in zip(self._embedding_feat_idx,
                                                       self._embedding_vocab_dims)]
                          if has_emb else [])

            kernel = _make_fused_kernel(onehot_meta, embed_meta, do_bn)

            inputs, in_specs = [], []
            if has_oh or has_emb:
                n_cat = categorical_data.shape[1]
                # One wide int32 block (single DMA) for all categorical columns.
                inputs.append(categorical_data.astype(jnp.int32))
                in_specs.append(pl.BlockSpec((tb, n_cat), lambda i: (i, 0)))
            if has_emb:
                vt, dt = self.embedding_table.shape
                inputs.append(self.embedding_table)
                in_specs.append(pl.BlockSpec((vt, dt), lambda i: (0, 0)))
            if do_bn:
                c = continuous_data.shape[1]
                inputs += [cont_f32, scale, shift]
                in_specs += [
                    pl.BlockSpec((tb, c), lambda i: (i, 0)),
                    pl.BlockSpec((1, c), lambda i: (0, 0)),
                    pl.BlockSpec((1, c), lambda i: (0, 0)),
                ]

            out_shape_list, out_spec_list = [], []
            if has_emb:
                dtot = self.embedded_cat_dim
                out_shape_list.append(jax.ShapeDtypeStruct((batch, dtot), jnp.float32))
                out_spec_list.append(pl.BlockSpec((tb, dtot), lambda i: (i, 0)))
            if has_oh:
                tot_oh = sum(self.onehot_cardinalities)
                out_shape_list.append(jax.ShapeDtypeStruct((batch, tot_oh), jnp.int32))
                out_spec_list.append(pl.BlockSpec((tb, tot_oh), lambda i: (i, 0)))
            if do_bn:
                c = continuous_data.shape[1]
                out_shape_list.append(jax.ShapeDtypeStruct((batch, c), jnp.float32))
                out_spec_list.append(pl.BlockSpec((tb, c), lambda i: (i, 0)))

            outs = pl.pallas_call(
                kernel,
                out_shape=tuple(out_shape_list),
                grid=grid,
                in_specs=in_specs,
                out_specs=tuple(out_spec_list),
                compiler_params=pltpu.CompilerParams(
                    dimension_semantics=("parallel",),   # batch tiles independent
                    vmem_limit_bytes=_VMEM_LIMIT_BYTES),
            )(*inputs)

            outs = list(outs)
            if has_emb:
                x_embed = outs.pop(0)
            if has_oh:
                x_cat = outs.pop(0)
            if do_bn:
                x_cont = outs.pop(0)

        return dict(
            binary=x_binary,
            categorical=x_cat,
            _categorical_orig=x_cat_orig,
            continuous=x_cont,
            embedding=x_embed,
        )


# ----------------------------------------------------------------------------
# Pure-JAX reference for verification
# ----------------------------------------------------------------------------
def _reference_outputs(layer, continuous, categorical, eps=1e-5):
    ref = {}
    if layer._binary_feat_idx:
        ref["binary"] = categorical[:, jnp.array(layer._binary_feat_idx)]
    if layer._onehot_feat_idx:
        ref["categorical"] = jnp.concatenate(
            [jax.nn.one_hot(categorical[:, i], c, dtype=jnp.int32)
             for i, c in zip(layer._onehot_feat_idx, layer.onehot_cardinalities)],
            axis=1)
        ref["_categorical_orig"] = categorical[:, jnp.array(layer._onehot_feat_idx)]
    if layer._embedding_feat_idx:
        embs = []
        voff = doff = 0
        for i, (v, d) in zip(layer._embedding_feat_idx, layer._embedding_vocab_dims):
            tbl = layer.embedding_table[voff:voff + v, doff:doff + d]
            embs.append(tbl[categorical[:, i]])
            voff += v
            doff += d
        ref["embedding"] = jnp.concatenate(embs, axis=1)
    if layer.batch_norm_continuous_input and continuous.shape[1] > 0:
        mean = continuous.mean(axis=0, keepdims=True)
        var = ((continuous - mean) ** 2).mean(axis=0, keepdims=True)
        ref["continuous"] = (continuous - mean) / jnp.sqrt(var + eps)
    else:
        ref["continuous"] = continuous
    return ref


def _run_and_check(layer, continuous, categorical):
    out = layer({"continuous": continuous, "categorical": categorical})
    jax.block_until_ready({k: v for k, v in out.items() if v is not None})
    ref = _reference_outputs(layer, continuous, categorical)
    assert jnp.array_equal(out["binary"], ref["binary"])
    assert jnp.array_equal(out["categorical"], ref["categorical"])
    assert jnp.array_equal(out["_categorical_orig"], ref["_categorical_orig"])
    # loose tolerance: MXU default-precision f32 matmul rounds table values ~1e-3 rel
    assert jnp.allclose(out["embedding"], ref["embedding"], rtol=2e-2, atol=2e-2)
    assert jnp.allclose(out["continuous"], ref["continuous"], rtol=1e-3, atol=1e-3)
    return out


# ----------------------------------------------------------------------------
if __name__ == "__main__":
    key = jax.random.PRNGKey(0)

    continuous_dim = 5
    # (cardinality, embed_dim): binary, one-hot, embedding, embedding, binary, one-hot
    categorical_embedding_dims = [(2, 1), (3, 1), (5, 4), (10, 6), (2, 1), (4, 1)]
    cards = jnp.array([c for c, _ in categorical_embedding_dims], jnp.int32)

    # Case 0: small batch, single tile.
    # Case 1: batch=32 with tile=8 -> 4-tile grid: exercises the batch-tiled
    #         "parallel" pipeline and the cross-tile BatchNorm reduction.
    for case, (batch, max_tile) in enumerate([(8, None), (32, 8)]):
        k_layer, k_cont, k_cat = jax.random.split(jax.random.fold_in(key, case), 3)
        layer = MixedEmbedding1dLayer(
            continuous_dim=continuous_dim,
            categorical_embedding_dims=categorical_embedding_dims,
            max_onehot_cardinality=4,
            embedding_dropout=0.0,
            batch_norm_continuous_input=True,
            key=k_layer,
            max_batch_tile=max_tile,
        )

        continuous = jax.random.normal(k_cont, (batch, continuous_dim),
                                       dtype=jnp.float32)
        categorical = (
            jax.random.randint(k_cat, (batch, len(categorical_embedding_dims)),
                               0, 10_000)
            % cards[None, :]
        ).astype(jnp.int32)

        out = _run_and_check(layer, continuous, categorical)

        # shape sanity checks
        assert out["binary"].shape == (batch, 2)
        assert out["categorical"].shape == (batch, 3 + 4)
        assert out["_categorical_orig"].shape == (batch, 2)
        assert out["continuous"].shape == (batch, continuous_dim)
        assert out["embedding"].shape == (batch, layer.embedded_cat_dim)
        assert int(jnp.sum(out["categorical"])) == batch * 2  # one hot/row/feature

    print("KERNEL_OK")
</pallas_src>

<mosaic_0001>
module attributes {stable_mosaic.version = 11 : i64} {
  func.func @_bn_stats_kernel(%arg0: i32, %arg1: memref<8x5xf32, #tpu.memory_space<vmem>>, %arg2: memref<1x5xf32, #tpu.memory_space<vmem>>, %arg3: memref<1x5xf32, #tpu.memory_space<vmem>>, %arg4: memref<1x5xf32, #tpu.memory_space<vmem>>, %arg5: memref<1x5xf32, #tpu.memory_space<vmem>>, %arg6: memref<1x5xf32, #tpu.memory_space<vmem>>, %arg7: memref<1x5xf32, #tpu.memory_space<vmem>>) attributes {dimension_semantics = [#tpu.dimension_semantics<arbitrary>], iteration_bounds = array<i64: 1>, scalar_prefetch = 0 : i64, scratch_operands = 2 : i64, tpu.core_type = #tpu.core_type<tc>, window_params = [{transform_indices = @transform_0, window_bounds = array<i64: 8, 5>}, {pipeline_mode = #tpu.pipeline_mode<synchronous>, transform_indices = @transform_1, window_bounds = array<i64: 1, 5>}, {pipeline_mode = #tpu.pipeline_mode<synchronous>, transform_indices = @transform_2, window_bounds = array<i64: 1, 5>}, {pipeline_mode = #tpu.pipeline_mode<synchronous>, transform_indices = @transform_3, window_bounds = array<i64: 1, 5>}, {pipeline_mode = #tpu.pipeline_mode<synchronous>, transform_indices = @transform_4, window_bounds = array<i64: 1, 5>}]} {
    %c0_i32 = arith.constant 0 : i32
    %0 = arith.cmpi eq, %arg0, %c0_i32 : i32
    %1 = arith.extui %0 : i1 to i32
    %c0_i32_0 = arith.constant 0 : i32
    %2 = arith.cmpi ne, %1, %c0_i32_0 : i32
    scf.if %2 {
      %cst_13 = arith.constant 0.000000e+00 : f32
      %18 = vector.broadcast %cst_13 : f32 to vector<1x5xf32>
      %c0_14 = arith.constant 0 : index
      %c0_15 = arith.constant 0 : index
      %19 = vector.load %arg6[%c0_14, %c0_15] : memref<1x5xf32, #tpu.memory_space<vmem>>, vector<1x5xf32>
      tpu.vector_store %arg6[%c0_14, %c0_15], %18 {strides = array<i32>} : memref<1x5xf32, #tpu.memory_space<vmem>>, vector<1x5xf32>,
      %cst_16 = arith.constant 0.000000e+00 : f32
      %20 = vector.broadcast %cst_16 : f32 to vector<1x5xf32>
      %c0_17 = arith.constant 0 : index
      %c0_18 = arith.constant 0 : index
      %21 = vector.load %arg7[%c0_17, %c0_18] : memref<1x5xf32, #tpu.memory_space<vmem>>, vector<1x5xf32>
      tpu.vector_store %arg7[%c0_17, %c0_18], %20 {strides = array<i32>} : memref<1x5xf32, #tpu.memory_space<vmem>>, vector<1x5xf32>,
    } else {
    }
    %c0 = arith.constant 0 : index
    %c0_1 = arith.constant 0 : index
    %3 = vector.load %arg1[%c0, %c0_1] : memref<8x5xf32, #tpu.memory_space<vmem>>, vector<8x5xf32>
    %c0_2 = arith.constant 0 : index
    %c0_3 = arith.constant 0 : index
    %4 = vector.load %arg6[%c0_2, %c0_3] : memref<1x5xf32, #tpu.memory_space<vmem>>, vector<1x5xf32>
    %cst = arith.constant dense<0.000000e+00> : vector<5xf32>
    %5 = vector.multi_reduction <add>, %3, %cst [0] : vector<8x5xf32> to vector<5xf32>
    %6 = vector.shape_cast %5 : vector<5xf32> to vector<1x5xf32>
    %7 = arith.addf %4, %6 : vector<1x5xf32>
    %c0_4 = arith.constant 0 : index
    %c0_5 = arith.constant 0 : index
    %8 = vector.load %arg6[%c0_4, %c0_5] : memref<1x5xf32, #tpu.memory_space<vmem>>, vector<1x5xf32>
    tpu.vector_store %arg6[%c0_4, %c0_5], %7 {strides = array<i32>} : memref<1x5xf32, #tpu.memory_space<vmem>>, vector<1x5xf32>,
    %c0_6 = arith.constant 0 : index
    %c0_7 = arith.constant 0 : index
    %9 = vector.load %arg7[%c0_6, %c0_7] : memref<1x5xf32, #tpu.memory_space<vmem>>, vector<1x5xf32>
    %10 = arith.mulf %3, %3 : vector<8x5xf32>
    %cst_8 = arith.constant dense<0.000000e+00> : vector<5xf32>
    %11 = vector.multi_reduction <add>, %10, %cst_8 [0] : vector<8x5xf32> to vector<5xf32>
    %12 = vector.shape_cast %11 : vector<5xf32> to vector<1x5xf32>
    %13 = arith.addf %9, %12 : vector<1x5xf32>
    %c0_9 = arith.constant 0 : index
    %c0_10 = arith.constant 0 : index
    %14 = vector.load %arg7[%c0_9, %c0_10] : memref<1x5xf32, #tpu.memory_space<vmem>>, vector<1x5xf32>
    tpu.vector_store %arg7[%c0_9, %c0_10], %13 {strides = array<i32>} : memref<1x5xf32, #tpu.memory_space<vmem>>, vector<1x5xf32>,
    %c0_i32_11 = arith.constant 0 : i32
    %15 = arith.cmpi eq, %arg0, %c0_i32_11 : i32
    %16 = arith.extui %15 : i1 to i32
    %c0_i32_12 = arith.constant 0 : i32
    %17 = arith.cmpi ne, %16, %c0_i32_12 : i32
    scf.if %17 {
      %c0_13 = arith.constant 0 : index
      %c0_14 = arith.constant 0 : index
      %18 = vector.load %arg6[%c0_13, %c0_14] : memref<1x5xf32, #tpu.memory_space<vmem>>, vector<1x5xf32>
      %cst_15 = arith.constant 1.250000e-01 : f32
      %19 = vector.broadcast %cst_15 : f32 to vector<1x5xf32>
      %20 = arith.mulf %18, %19 : vector<1x5xf32>
      %c0_16 = arith.constant 0 : index
      %c0_17 = arith.constant 0 : index
      %21 = vector.load %arg7[%c0_16, %c0_17] : memref<1x5xf32, #tpu.memory_space<vmem>>, vector<1x5xf32>
      %cst_18 = arith.constant 1.250000e-01 : f32
      %22 = vector.broadcast %cst_18 : f32 to vector<1x5xf32>
      %23 = arith.mulf %21, %22 : vector<1x5xf32>
      %24 = arith.mulf %20, %20 : vector<1x5xf32>
      %25 = arith.subf %23, %24 : vector<1x5xf32>
      %cst_19 = arith.constant 9.99999974E-6 : f32
      %26 = vector.broadcast %cst_19 : f32 to vector<1x5xf32>
      %27 = arith.addf %25, %26 : vector<1x5xf32>
      %28 = math.rsqrt %27 : vector<1x5xf32>
      %c0_20 = arith.constant 0 : index
      %c0_21 = arith.constant 0 : index
      %29 = vector.load %arg2[%c0_20, %c0_21] : memref<1x5xf32, #tpu.memory_space<vmem>>, vector<1x5xf32>
      %30 = arith.mulf %29, %28 : vector<1x5xf32>
      %c0_22 = arith.constant 0 : index
      %c0_23 = arith.constant 0 : index
      %31 = vector.load %arg4[%c0_22, %c0_23] : memref<1x5xf32, #tpu.memory_space<vmem>>, vector<1x5xf32>
      tpu.vector_store %arg4[%c0_22, %c0_23], %30 {strides = array<i32>} : memref<1x5xf32, #tpu.memory_space<vmem>>, vector<1x5xf32>,
      %c0_24 = arith.constant 0 : index
      %c0_25 = arith.constant 0 : index
      %32 = vector.load %arg3[%c0_24, %c0_25] : memref<1x5xf32, #tpu.memory_space<vmem>>, vector<1x5xf32>
      %33 = arith.mulf %20, %30 : vector<1x5xf32>
      %34 = arith.subf %32, %33 : vector<1x5xf32>
      %c0_26 = arith.constant 0 : index
      %c0_27 = arith.constant 0 : index
      %35 = vector.load %arg5[%c0_26, %c0_27] : memref<1x5xf32, #tpu.memory_space<vmem>>, vector<1x5xf32>
      tpu.vector_store %arg5[%c0_26, %c0_27], %34 {strides = array<i32>} : memref<1x5xf32, #tpu.memory_space<vmem>>, vector<1x5xf32>,
    } else {
    }
    return
  }
  func.func @transform_0(%arg0: i32) -> (i32, i32) {
    %c0_i32 = arith.constant 0 : i32
    %c0_i32_0 = arith.constant 0 : i32
    return %arg0, %c0_i32 : i32, i32
  }
  func.func @transform_1(%arg0: i32) -> (i32, i32) {
    %c0_i32 = arith.constant 0 : i32
    %c0_i32_0 = arith.constant 0 : i32
    %c0_i32_1 = arith.constant 0 : i32
    return %c0_i32, %c0_i32_0 : i32, i32
  }
  func.func @transform_2(%arg0: i32) -> (i32, i32) {
    %c0_i32 = arith.constant 0 : i32
    %c0_i32_0 = arith.constant 0 : i32
    %c0_i32_1 = arith.constant 0 : i32
    return %c0_i32, %c0_i32_0 : i32, i32
  }
  func.func @transform_3(%arg0: i32) -> (i32, i32) {
    %c0_i32 = arith.constant 0 : i32
    %c0_i32_0 = arith.constant 0 : i32
    %c0_i32_1 = arith.constant 0 : i32
    return %c0_i32, %c0_i32_0 : i32, i32
  }
  func.func @transform_4(%arg0: i32) -> (i32, i32) {
    %c0_i32 = arith.constant 0 : i32
    %c0_i32_0 = arith.constant 0 : i32
    %c0_i32_1 = arith.constant 0 : i32
    return %c0_i32, %c0_i32_0 : i32, i32
  }
}

</mosaic_0001>

<llo_original>
// kernel: tpu_custom_call.1
$region0: #{tpu_custom_call.1}
  #allocation0 [shape = 'u32[]', space=smem, size = 0x4, offset = 0x4, fixed_abs, tag = 'smem constant byte address 0x4 - core index']
  #allocation1 [shape = 'u32[144,128]{1,0:T(1,128)}', space=vmem, size = 0x12000, scoped, tag = 'internal scratch']
  #allocation2 [shape = 'f32[1,5]{1,0:T(1,128)}', space=vmem, size = 0x200, scoped, tag = 'scratch operand']
  #allocation3 [shape = 'f32[1,5]{1,0:T(1,128)}', space=vmem, size = 0x200, scoped, tag = 'scratch operand']
  %s0 = inlined_call_operand.hbm [shape: f32[8,5], index: 0, kind: input, shape index: {}]
  %s1 = inlined_call_operand.vmem [shape: f32[1,5], index: 1, kind: input, shape index: {}]
  %s2 = inlined_call_operand.vmem [shape: f32[1,5], index: 2, kind: input, shape index: {}]
  %s3 = inlined_call_operand.hbm [shape: f32[1,5], index: 3, kind: output, shape index: {0}]
  %s4 = inlined_call_operand.hbm [shape: f32[1,5], index: 4, kind: output, shape index: {1}]
  %5 = xla_tuple %s3, %s4
  %s6 = sld [smem:[#allocation0]]
  $region42: #{tpu_custom_call.1} parent=0
    _
  %s8 = ssub.s32 1, %s6
  %s9 = scalar_select 0, %s8, %s6
  $region1: #{tpu_custom_call.1} parent=0
    #allocation4 [shape = 'u8[4096]{0}', space=vmem, size = 0x1000, scoped, tag = 'input window, operand 0, single buffered']
    #allocation5 [shape = 's32[1]{0}', space=sflag, size = 0x4, scoped, tag = 'scoped memory for tpu_custom_call.1']
    #allocation6 [shape = 's32[1]{0}', space=sflag, size = 0x4, scoped, tag = 'scoped memory for tpu_custom_call.1']
    #allocation7 [shape = 'u8[512]{0}', space=vmem, size = 0x400, scoped, tag = 'output window, operand 0, single buffered']
    #allocation8 [shape = 'u8[512]{0}', space=vmem, size = 0x400, scoped, tag = 'output window, operand 1, single buffered']
    #allocation9 [shape = 's32[1]{0}', space=sflag, size = 0x4, scoped, tag = 'scoped memory for tpu_custom_call.1']
    %10 = vsyncpa [#allocation5], 0
    %11 = vsyncpa [#allocation6], 0
    %12 = vsyncpa [#allocation9], 0
    // Predicated region
    $region2: #{tpu_custom_call.1} parent=1 // pred_check
      _
    $region3: #{tpu_custom_call.1} parent=1 // pred_check_branch
      %14 = sbr.rel (0) target = $region5
    $region4: #{tpu_custom_call.1} parent=1 // pred_region
      %s16 = ssub.s32 128, 128
      %17 = vsyncadd [#allocation5], %s16
      %s19 = sshll.u32 [#allocation4], 4
      %s20 = int_to_ptr.vmem [resolvable:$true] %s19
      %22 = dma.hbm_to_vmem [thread:$0]  %s0, 128, %s20, [#allocation5]
    $region5: #{tpu_custom_call.1} parent=1 // pred_fallthru
      _
    // Predicated region
    $region6: #{tpu_custom_call.1} parent=1 // pred_check
      _
    $region7: #{tpu_custom_call.1} parent=1 // pred_check_branch
      %24 = sbr.rel (0) target = $region9
    $region8: #{tpu_custom_call.1} parent=1 // pred_region
      _
    $region9: #{tpu_custom_call.1} parent=1 // pred_fallthru
      _
    // Predicated region
    $region10: #{tpu_custom_call.1} parent=1 // pred_check
      _
    $region11: #{tpu_custom_call.1} parent=1 // pred_check_branch
      %26 = sbr.rel (0) target = $region13
    $region12: #{tpu_custom_call.1} parent=1 // pred_region
      _
    $region13: #{tpu_custom_call.1} parent=1 // pred_fallthru
      _
    // Predicated region
    $region14: #{tpu_custom_call.1} parent=1 // pred_check
      _
    $region15: #{tpu_custom_call.1} parent=1 // pred_check_branch
      %28 = sbr.rel (0) target = $region17
    $region16: #{tpu_custom_call.1} parent=1 // pred_region
      %29 = dma.done [#allocation5], 128
    $region17: #{tpu_custom_call.1} parent=1 // pred_fallthru
      _
    %p30 = scmp.eq.s32.totalorder 0, 0
    // Predicated region
    $region18: #{tpu_custom_call.1} parent=1 // pred_check
      %p31 = pneg %p30
    $region19: #{tpu_custom_call.1} parent=1 // pred_check_branch
      %33 = sbr.rel (%p31) target = $region21
    $region20: #{tpu_custom_call.1} parent=1 // pred_region
      %vm34 = vcmask 32768
      %35 = vst.msk [vmem:[#allocation2] sm:$0x1] %vm34, 0.0
      %36 = vst.msk [vmem:[#allocation3] sm:$0x1] %vm34, 0.0
    $region21: #{tpu_custom_call.1} parent=1 // pred_fallthru
      _
    %v37 = vld [vmem:[#allocation4] sm:$0xff]
    %v38 = vld [vmem:[#allocation2] sm:$0x1]
    %vm39 = vcmask 39936
    %v40 = vsel %vm39, %v37, 0.0
    %v41 = vrot.slane %v40, 4
    %v42 = vadd.f32 %v40, %v41
    %v43 = vrot.slane %v42, 2
    %v44 = vadd.f32 %v42, %v43
    %v45 = vrot.slane %v44, 1
    %v46 = vadd.f32 %v44, %v45
    %v47 = vadd.f32 %v38, %v46
    %vm48 = vcmask 32768
    %49 = vst.msk [vmem:[#allocation2] sm:$0x1] %vm48, %v47
    %v50 = vld [vmem:[#allocation3] sm:$0x1]
    %v51 = vmul.f32 %v37, %v37
    %v52 = vsel %vm39, %v51, 0.0
    %v53 = vrot.slane %v52, 4
    %v54 = vadd.f32 %v52, %v53
    %v55 = vrot.slane %v54, 2
    %v56 = vadd.f32 %v54, %v55
    %v57 = vrot.slane %v56, 1
    %v58 = vadd.f32 %v56, %v57
    %v59 = vadd.f32 %v50, %v58
    %60 = vst.msk [vmem:[#allocation3] sm:$0x1] %vm48, %v59
    // Predicated region
    $region22: #{tpu_custom_call.1} parent=1 // pred_check
      %p61 = pneg %p30
    $region23: #{tpu_custom_call.1} parent=1 // pred_check_branch
      %63 = sbr.rel (%p61) target = $region25
    $region24: #{tpu_custom_call.1} parent=1 // pred_region
      %v64 = vld [vmem:[#allocation2] sm:$0x1]
      %v65 = vmul.f32 %v64, 0.125
      %v66 = vld [vmem:[#allocation3] sm:$0x1]
      %v67 = vmul.f32 %v66, 0.125
      %v68 = vmul.f32 %v65, %v65
      %v69 = vsub.f32 %v67, %v68
      %v70 = vadd.f32 %v69, 1e-05
      %v71 = vrsqrt.pop %v70
      %v72 = vld [vmem:[%s1] sm:$0x1]
      %v73 = vmul.f32 %v72, %v71
      %74 = vst.msk [vmem:[#allocation7] sm:$0x1] %vm48, %v73
      %v75 = vld [vmem:[%s2] sm:$0x1]
      %v76 = vmul.f32 %v65, %v73
      %v77 = vsub.f32 %v75, %v76
      %78 = vst.msk [vmem:[#allocation8] sm:$0x1] %vm48, %v77
    $region25: #{tpu_custom_call.1} parent=1 // pred_fallthru
      _
    // Predicated region
    $region26: #{tpu_custom_call.1} parent=1 // pred_check
      _
    $region27: #{tpu_custom_call.1} parent=1 // pred_check_branch
      %80 = sbr.rel (0) target = $region29
    $region28: #{tpu_custom_call.1} parent=1 // pred_region
      %s82 = ssub.s32 16, 16
      %83 = vsyncadd [#allocation6], %s82
      %s85 = sshll.u32 [#allocation7], 4
      %s86 = int_to_ptr.vmem [resolvable:$true] %s85
      %88 = dma.vmem_to_hbm [thread:$0]  %s86, 16, %s3, [#allocation6]
    $region29: #{tpu_custom_call.1} parent=1 // pred_fallthru
      _
    // Predicated region
    $region30: #{tpu_custom_call.1} parent=1 // pred_check
      _
    $region31: #{tpu_custom_call.1} parent=1 // pred_check_branch
      %90 = sbr.rel (0) target = $region33
    $region32: #{tpu_custom_call.1} parent=1 // pred_region
      %s92 = ssub.s32 16, 16
      %93 = vsyncadd [#allocation9], %s92
      %s95 = sshll.u32 [#allocation8], 4
      %s96 = int_to_ptr.vmem [resolvable:$true] %s95
      %98 = dma.vmem_to_hbm [thread:$0]  %s96, 16, %s4, [#allocation9]
    $region33: #{tpu_custom_call.1} parent=1 // pred_fallthru
      _
    // Predicated region
    $region34: #{tpu_custom_call.1} parent=1 // pred_check
      _
    $region35: #{tpu_custom_call.1} parent=1 // pred_check_branch
      %100 = sbr.rel (0) target = $region37
    $region36: #{tpu_custom_call.1} parent=1 // pred_region
      %101 = dma.done [#allocation6], 16
    $region37: #{tpu_custom_call.1} parent=1 // pred_fallthru
      _
    // Predicated region
    $region38: #{tpu_custom_call.1} parent=1 // pred_check
      _
    $region39: #{tpu_custom_call.1} parent=1 // pred_check_branch
      %103 = sbr.rel (0) target = $region41
    $region40: #{tpu_custom_call.1} parent=1 // pred_region
      %104 = dma.done [#allocation9], 16
    $region41: #{tpu_custom_call.1} parent=1 // pred_fallthru
      _
    %105 = vsyncpa [#allocation5], 1
    %106 = vsyncpa [#allocation6], 1
    %107 = vsyncpa [#allocation9], 1

</llo_original>
